<compile_context>
chip_gen: v7x
topology: tpu7x:2x2x1
jax: 0.10.0
libtpu: 0.0.40
codegen_flags: <defaults>
</compile_context>

<pallas_src>
import jax
import jax.numpy as jnp
from jax.experimental import pallas as pl
from jax.experimental.pallas import tpu as pltpu

K = 3  # number of candidate ops in the layer choice


def darts_choice_kernel(wt_ref, x_ref, o_ref):
    # wt_ref: (tc, C_in)  slice of the pre-mixed, transposed 1x1-conv weight
    # x_ref:  (C_in, ts)  spatial tile, spatial on the lane axis
    # o_ref:  (tc, ts)
    o_ref[...] = jnp.dot(
        wt_ref[...], x_ref[...], preferred_element_type=jnp.float32
    ).astype(o_ref.dtype)


def _round_up(x, m):
    return -(-x // m) * m


def _vmem_capacity_bytes():
    """Physical VMEM of the current chip; conservative 64 MiB (v7x per-TC)
    fallback if the query is unavailable."""
    try:
        cap = getattr(pltpu.get_tpu_info(), "vmem_capacity_bytes", None)
        if cap:
            return int(cap)
    except Exception:
        pass
    return 64 << 20


def _choose_tiles(B, S, C, itemsize, budget):
    """Pick (tc_out, ts): the C_out tile of the weight/output and the spatial
    tile, so that the double-buffered x/out tiles plus the weight block (with
    its actual buffer count) fit `budget`, using dtype-correct sublane
    padding, and keeping >= 2 parallel grid steps whenever possible so v7x's
    two TensorCores are both fed."""
    sub = max(8, 32 // itemsize)        # sublane rows: 8 f32, 16 bf16, 32 int8
    c_rows = _round_up(C, sub)          # padded rows of the (C, ts) x tile
    c_lanes = _round_up(C, 128)         # padded lanes of the (tc, C) weight

    def w_bytes(tc, nbuf):
        return nbuf * _round_up(tc, sub) * c_lanes * itemsize

    def xo_bytes(tc, ts):
        tsp = _round_up(ts, 128)
        return 2 * tsp * itemsize * (c_rows + _round_up(tc, sub))

    # C_out tile: keep the whole weight resident (single-buffered) when it
    # fits next to a minimal 128-lane spatial tile, otherwise tile C_out.
    if w_bytes(C, 1) + xo_bytes(C, 128) <= budget:
        tc = C
    else:
        tc = sub
        cand = (C // sub) * sub
        while cand >= sub:
            if w_bytes(cand, 2) + xo_bytes(cand, 128) <= budget:
                tc = cand
                break
            cand -= sub
    n_co = pl.cdiv(C, tc)
    wbuf = 1 if n_co == 1 else 2

    # Spatial tile: largest multiple of 128 that fits the budget.
    if S <= 128:
        ts = S
    else:
        ts = 128
        t = 128
        s_cap = _round_up(S, 128)
        while t <= s_cap:
            if w_bytes(tc, wbuf) + xo_bytes(tc, t) <= budget:
                ts = t
            t += 128
        # Ensure >= 2 parallel grid steps (v7x has 2 TensorCores per chip).
        while B * n_co * pl.cdiv(S, ts) < 2 and ts > 128:
            ts = max(128, _round_up(ts // 2, 128))
    return tc, ts


def darts_layer_choice(x_nchw, weights, alpha, compute_dtype=None):
    """x: (B, C, H, W); weights: (K, C_in, C_out) per-op 1x1-conv weights;
    alpha: (K,).  Returns (B, C, H, W) in `compute_dtype` (default x.dtype)."""
    B, C, H, W = x_nchw.shape
    S = H * W
    cdtype = jnp.dtype(compute_dtype) if compute_dtype is not None else x_nchw.dtype
    itemsize = cdtype.itemsize

    # DARTS mixing, done once (exact because the candidates are linear):
    #   W_mix^T[co, ci] = sum_k softmax(alpha)_k * W_k[ci, co]
    # TODO(synk): non-linear candidates (pooling / activations / kxk convs)
    # cannot be folded like this; they would need a stacked per-op kernel path.
    soft = jax.nn.softmax(alpha.astype(jnp.float32), axis=-1)
    wt = jnp.einsum("k,kio->oi", soft, weights.astype(jnp.float32)).astype(cdtype)

    x3 = x_nchw.reshape(B, C, S).astype(cdtype)   # free reshape, no transpose pass

    vmem_cap = _vmem_capacity_bytes()
    budget = vmem_cap // 2                        # kernel working-set target
    vmem_limit = min(int(vmem_cap * 0.75), 128 << 20)
    tc, ts = _choose_tiles(B, S, C, itemsize, budget)
    n_co = pl.cdiv(C, tc)
    n_s = pl.cdiv(S, ts)

    # Single-buffer the weight when it is resident (constant block index) and
    # large enough for the reclaimed second buffer to matter.
    w_block_bytes = _round_up(tc, max(8, 32 // itemsize)) * _round_up(C, 128) * itemsize
    wt_index = lambda b, c, s: (c, 0)
    if n_co == 1 and w_block_bytes >= (512 << 10):
        wt_spec = pl.BlockSpec((tc, C), wt_index, pipeline_mode=pl.Buffered(1))
    else:
        wt_spec = pl.BlockSpec((tc, C), wt_index)

    cost = pl.CostEstimate(
        flops=2 * B * S * C * C,
        bytes_accessed=2 * B * C * S * itemsize + C * C * itemsize,
        transcendentals=0,
    )

    out3 = pl.pallas_call(
        darts_choice_kernel,
        out_shape=jax.ShapeDtypeStruct((B, C, S), cdtype),
        grid_spec=pltpu.PrefetchScalarGridSpec(
            num_scalar_prefetch=0,
            grid=(B, n_co, n_s),
            in_specs=[
                wt_spec,
                # (C, ts) spatial tile of batch element b (batch dim squeezed).
                # Index is independent of c, so with spatial innermost the x
                # tile is not re-DMA'd across the C_out axis.
                # TODO(synk): bump to pl.Buffered(3) only if a profile shows
                # exposed DMA at tiny C; default double-buffering kept until
                # verified.
                pl.BlockSpec((None, C, ts), lambda b, c, s: (b, 0, s)),
            ],
            out_specs=pl.BlockSpec((None, tc, ts), lambda b, c, s: (b, c, s)),
        ),
        compiler_params=pltpu.CompilerParams(
            # all axes independent -> shardable across v7x's 2 TensorCores
            dimension_semantics=("parallel", "parallel", "parallel"),
            vmem_limit_bytes=vmem_limit,
        ),
        cost_estimate=cost,
    )(wt, x3)

    return out3.reshape(B, C, H, W)


def reference(x_nchw, weights, alpha):
    """Literal (unfused) module semantics: run every op, stack, softmax-weight."""
    B, C, H, W = x_nchw.shape
    x_mat = jnp.transpose(x_nchw, (0, 2, 3, 1)).reshape(B * H * W, C)
    op_results = jnp.stack(
        [jnp.einsum("mc,cd->md", x_mat, weights[k]) for k in range(K)])
    sm = jax.nn.softmax(alpha, axis=-1)
    out = jnp.sum(op_results * sm[:, None, None], axis=0)
    return out.reshape(B, H, W, C).transpose(0, 3, 1, 2)


if __name__ == "__main__":
    key = jax.random.PRNGKey(0)
    kx, kw, ka = jax.random.split(key, 3)

    B, C, H, W = 2, 4, 16, 16
    x = jax.random.normal(kx, (B, C, H, W), dtype=jnp.float32)
    # per-op 1x1-conv weights, (K, C_in, C_out), deterministic init
    weights = jax.random.normal(kw, (K, C, C), dtype=jnp.float32) * 0.1
    # op_alpha = randn(K) * 0.001, matching the PyTorch __init__
    alpha = jax.random.normal(ka, (K,), dtype=jnp.float32) * 0.001

    ref = reference(x, weights, alpha)

    # Exact f32 path (tight check that the fold is algebraically equivalent).
    out_f32 = jax.block_until_ready(darts_layer_choice(x, weights, alpha))
    assert out_f32.shape == (B, C, H, W)
    assert jnp.allclose(out_f32, ref, atol=1e-4, rtol=1e-4), "f32 mismatch vs reference"

    # Bandwidth-optimized bf16 path (primary perf recommendation).
    out_bf16 = jax.block_until_ready(
        darts_layer_choice(x, weights, alpha, compute_dtype=jnp.bfloat16))
    assert out_bf16.shape == (B, C, H, W)
    assert out_bf16.dtype == jnp.bfloat16
    assert jnp.allclose(out_bf16.astype(jnp.float32), ref, atol=3e-2, rtol=3e-2), \
        "bf16 mismatch vs reference"

    print("KERNEL_OK")
</pallas_src>

<mosaic_0001>
module attributes {stable_mosaic.version = 11 : i64} {
  func.func @darts_choice_kernel(%arg0: i32, %arg1: i32, %arg2: i32, %arg3: memref<4x4xf32, #tpu.memory_space<vmem>>, %arg4: memref<1x4x256xf32, #tpu.memory_space<vmem>>, %arg5: memref<1x4x256xf32, #tpu.memory_space<vmem>>) attributes {dimension_semantics = [#tpu.dimension_semantics<parallel>, #tpu.dimension_semantics<parallel>, #tpu.dimension_semantics<parallel>], iteration_bounds = array<i64: 2, 1, 1>, scalar_prefetch = 0 : i64, scratch_operands = 0 : i64, tpu.core_type = #tpu.core_type<tc>, window_params = [{transform_indices = @transform_0, window_bounds = array<i64: 4, 4>}, {transform_indices = @transform_1, window_bounds = array<i64: 1, 4, 256>}, {transform_indices = @transform_2, window_bounds = array<i64: 1, 4, 256>}]} {
    %c0 = arith.constant 0 : index
    %c0_0 = arith.constant 0 : index
    %0 = vector.load %arg3[%c0, %c0_0] : memref<4x4xf32, #tpu.memory_space<vmem>>, vector<4x4xf32>
    %c0_1 = arith.constant 0 : index
    %c0_2 = arith.constant 0 : index
    %c0_3 = arith.constant 0 : index
    %1 = vector.load %arg4[%c0_1, %c0_2, %c0_3] : memref<1x4x256xf32, #tpu.memory_space<vmem>>, vector<1x4x256xf32>
    %2 = vector.shape_cast %1 : vector<1x4x256xf32> to vector<4x256xf32>
    %cst = arith.constant dense<0.000000e+00> : vector<4x256xf32>
    %3 = tpu.matmul %0, %2, %cst {dimension_numbers = #tpu.dot_dimension_numbers<[1], [0], [0], [1], [0, 0, 1, 1], [], []>} : vector<4x4xf32>, vector<4x256xf32>, vector<4x256xf32> -> vector<4x256xf32>
    %c0_4 = arith.constant 0 : index
    %c0_5 = arith.constant 0 : index
    %c0_6 = arith.constant 0 : index
    %4 = vector.load %arg5[%c0_4, %c0_5, %c0_6] : memref<1x4x256xf32, #tpu.memory_space<vmem>>, vector<1x4x256xf32>
    %5 = vector.shape_cast %4 : vector<1x4x256xf32> to vector<4x256xf32>
    %6 = vector.shape_cast %3 : vector<4x256xf32> to vector<1x4x256xf32>
    tpu.vector_store %arg5[%c0_4, %c0_5, %c0_6], %6 {strides = array<i32>} : memref<1x4x256xf32, #tpu.memory_space<vmem>>, vector<1x4x256xf32>,
    return
  }
  func.func @transform_0(%arg0: i32, %arg1: i32, %arg2: i32) -> (i32, i32) {
    %c0_i32 = arith.constant 0 : i32
    %c0_i32_0 = arith.constant 0 : i32
    return %arg1, %c0_i32 : i32, i32
  }
  func.func @transform_1(%arg0: i32, %arg1: i32, %arg2: i32) -> (i32, i32, i32) {
    %c0_i32 = arith.constant 0 : i32
    %c0_i32_0 = arith.constant 0 : i32
    return %arg0, %c0_i32, %arg2 : i32, i32, i32
  }
  func.func @transform_2(%arg0: i32, %arg1: i32, %arg2: i32) -> (i32, i32, i32) {
    %c0_i32 = arith.constant 0 : i32
    return %arg0, %arg1, %arg2 : i32, i32, i32
  }
}

</mosaic_0001>

<llo_original>
// kernel: tpu_custom_call.1
$region0: #{tpu_custom_call.1}
  #allocation0 [shape = 'u32[]', space=smem, size = 0x4, offset = 0x4, fixed_abs, tag = 'smem constant byte address 0x4 - core index']
  #allocation1 [shape = 'u32[144,128]{1,0:T(1,128)}', space=vmem, size = 0x12000, scoped, tag = 'internal scratch']
  %s0 = inlined_call_operand.hbm [shape: f32[4,4], index: 0, kind: input, shape index: {}]
  %s1 = inlined_call_operand.hbm [shape: f32[2,4,256], index: 1, kind: input, shape index: {}]
  %s2 = inlined_call_operand.hbm [shape: f32[2,4,256], index: 2, kind: output, shape index: {}]
  %s3 = sld [smem:[#allocation0]]
  $region49: #{tpu_custom_call.1} parent=0
    _
  %s5 = ssub.s32 1, %s3
  %s6 = scalar_select 0, %s5, %s3
  $region1: #{tpu_custom_call.1} parent=0
    #allocation2 [shape = 'u8[2048]{0}', space=vmem, size = 0x800, scoped, tag = 'input window, operand 0, single buffered']
    #allocation3 [shape = 's32[2]{0}', space=sflag, size = 0x8, scoped, tag = 'scoped memory for tpu_custom_call.1']
    #allocation4 [shape = 's32[2]{0}', space=sflag, size = 0x8, scoped, tag = 'scoped memory for tpu_custom_call.1']
    #allocation5 [shape = 'u8[8192]{0}', space=vmem, size = 0x2000, scoped, tag = 'input window, operand 1']
    #allocation6 [shape = 's32[2]{0}', space=sflag, size = 0x8, scoped, tag = 'scoped memory for tpu_custom_call.1']
    #allocation7 [shape = 'u8[8192]{0}', space=vmem, size = 0x2000, scoped, tag = 'output window, operand 0']
    %7 = vsyncpa [#allocation3], 0
    %8 = vsyncpa [#allocation6], 0
    %s9 = scalar_lea.sflag [#allocation6], 1
    %10 = vsyncpa %s9, 0
    %11 = vsyncpa [#allocation4], 0
    %s12 = scalar_lea.sflag [#allocation4], 1
    %13 = vsyncpa %s12, 0
    loop: start=0, step=1, limit=4
    $region2: #{tpu_custom_call.1} parent=1 // loop_pre_header
      _
    $region3: #{tpu_custom_call.1} parent=1 // loop_header
      %s15 = sphi 0, %s19
      %p16 = scmp.ge.s32.totalorder %s15, 4
      %s22 = sphi 0, %s41
      %s23 = sphi 0, %s37
      %s24 = sphi 0, %s33
      %s25 = sphi 0, %s22
      %s26 = sphi 0, %s23
      %s27 = sphi 0, %s24
      %s28 = sphi 0, %s25
      %s29 = sphi 0, %s26
      %s30 = sphi 0, %s27
      %s44 = sphi 0, %s46
      %s47 = sphi 0, %s44
      %s48 = sphi 0, %s47
      %s64 = sphi 0, %s48
      %s72 = sphi 0, %s74
      %s75 = sphi 0, %s72
      %s76 = sphi 0, %s75
      %s92 = sphi 0, %s76
      %s102 = sphi 0, %s104
      %s105 = sphi 0, %s102
      %s106 = sphi 0, %s105
      %s122 = sphi 0, %s106
    $region4: #{tpu_custom_call.1} parent=1 // loop_header_branch
      %18 = sbr.rel (%p16) target = $region8
    $region5: #{tpu_custom_call.1} parent=1 // loop_body
      %s20 = ssub.s32 %s15, 1
      %s21 = ssub.s32 %s15, 2
      %s31 = sadd.s32 1, %s24
      %p32 = scmp.ge.s32.totalorder %s31, 1
      %s33 = scalar_select %p32, 0, %s31
      %s34 = sadd.s32 1, %s23
      %s35 = scalar_select %p32, %s34, %s23
      %p36 = scmp.ge.s32.totalorder %s35, 1
      %s37 = scalar_select %p36, 0, %s35
      %s38 = sadd.s32 1, %s22
      %s39 = scalar_select %p36, %s38, %s22
      %p40 = scmp.ge.s32.totalorder %s39, 2
      %s41 = scalar_select %p40, 0, %s39
      %s42 = ssub.s32 %s23, %s37
      %p43 = scmp.eq.s32.totalorder %s42, 0
      %s45 = sadd.s32 %s44, 1
      %s46 = scalar_select %p43, %s44, %s45
      %p49 = pneg %p43
      %p50 = scmp.eq.s32.totalorder %s15, 1
      %p51 = por %p49, %p50
      %p52 = scmp.ne.s32.totalorder %s44, %s47
      %p53 = scmp.eq.s32.totalorder %s15, 0
      %p54 = por %p52, %p53
      %p55 = scmp.ne.s32.totalorder %s44, %s47
      %p56 = scmp.eq.s32.totalorder %s20, 1
      %p57 = por %p55, %p56
      %p58 = scmp.ne.s32.totalorder %s47, %s48
      %p59 = scmp.eq.s32.totalorder %s20, 0
      %p60 = por %p58, %p59
      %p61 = scmp.ne.s32.totalorder %s47, %s48
      %p62 = scmp.eq.s32.totalorder %s21, 1
      %p63 = por %p61, %p62
      %p65 = scmp.ne.s32.totalorder %s48, %s64
      %p66 = scmp.eq.s32.totalorder %s21, 0
      %p67 = por %p65, %p66
      %s68 = ssub.s32 %s22, %s41
      %s69 = ssub.s32 %s24, %s33
      %s70 = sor.u32 %s68, %s69
      %p71 = scmp.eq.s32.totalorder %s70, 0
      %s73 = sadd.s32 %s72, 1
      %s74 = scalar_select %p71, %s72, %s73
      %p77 = pneg %p71
      %p78 = scmp.eq.s32.totalorder %s15, 1
      %p79 = por %p77, %p78
      %p80 = scmp.ne.s32.totalorder %s72, %s75
      %p81 = scmp.eq.s32.totalorder %s15, 0
      %p82 = por %p80, %p81
      %p83 = scmp.ne.s32.totalorder %s72, %s75
      %p84 = scmp.eq.s32.totalorder %s20, 1
      %p85 = por %p83, %p84
      %p86 = scmp.ne.s32.totalorder %s75, %s76
      %p87 = scmp.eq.s32.totalorder %s20, 0
      %p88 = por %p86, %p87
      %p89 = scmp.ne.s32.totalorder %s75, %s76
      %p90 = scmp.eq.s32.totalorder %s21, 1
      %p91 = por %p89, %p90
      %p93 = scmp.ne.s32.totalorder %s76, %s92
      %p94 = scmp.eq.s32.totalorder %s21, 0
      %p95 = por %p93, %p94
      %s96 = ssub.s32 %s22, %s41
      %s97 = ssub.s32 %s23, %s37
      %s98 = sor.u32 %s96, %s97
      %s99 = ssub.s32 %s24, %s33
      %s100 = sor.u32 %s98, %s99
      %p101 = scmp.eq.s32.totalorder %s100, 0
      %s103 = sadd.s32 %s102, 1
      %s104 = scalar_select %p101, %s102, %s103
      %p107 = pneg %p101
      %p108 = scmp.eq.s32.totalorder %s15, 1
      %p109 = por %p107, %p108
      %p110 = scmp.ne.s32.totalorder %s102, %s105
      %p111 = scmp.eq.s32.totalorder %s15, 0
      %p112 = por %p110, %p111
      %p113 = scmp.ne.s32.totalorder %s102, %s105
      %p114 = scmp.eq.s32.totalorder %s20, 1
      %p115 = por %p113, %p114
      %p116 = scmp.ne.s32.totalorder %s105, %s106
      %p117 = scmp.eq.s32.totalorder %s20, 0
      %p118 = por %p116, %p117
      %p119 = scmp.ne.s32.totalorder %s105, %s106
      %p120 = scmp.eq.s32.totalorder %s21, 1
      %p121 = por %p119, %p120
      %p123 = scmp.ne.s32.totalorder %s106, %s122
      %p124 = scmp.eq.s32.totalorder %s21, 0
      %p125 = por %p123, %p124
      %p126 = scmp.le.s32.totalorder 1, %s15
      %p127 = scmp.lt.s32.totalorder %s15, 3
      %p128 = pnand %p126, %p127
      %p129 = pneg %p128
      // Predicated region
      $region9: #{tpu_custom_call.1} parent=5 // pred_check
        _
      $region10: #{tpu_custom_call.1} parent=5 // pred_check_branch
        %131 = sbr.rel (%p128) target = $region12
      $region11: #{tpu_custom_call.1} parent=5 // pred_region
        %s132 = ssub.s32 %s15, 1
        // Predicated region
        $region13: #{tpu_custom_call.1} parent=11 // pred_check
          %p133 = pneg %p60
        $region14: #{tpu_custom_call.1} parent=11 // pred_check_branch
          %135 = sbr.rel (%p133) target = $region16
        $region15: #{tpu_custom_call.1} parent=11 // pred_region
          %s137 = ssub.s32 64, 64
          %138 = vsyncadd [#allocation3], %s137
          %s139 = smul.addr %s26, 64
          %s140 = scalar_lea.hbm %s0, %s139
          %s142 = sshll.u32 [#allocation2], 4
          %s143 = int_to_ptr.vmem [resolvable:$true] %s142
          %145 = dma.hbm_to_vmem [thread:$0]  %s140, 64, %s143, [#allocation3]
        $region16: #{tpu_custom_call.1} parent=11 // pred_fallthru
          _
      $region12: #{tpu_custom_call.1} parent=5 // pred_fallthru
        _
      %p146 = scmp.lt.s32.totalorder %s15, 2
      // Predicated region
      $region17: #{tpu_custom_call.1} parent=5 // pred_check
        %p147 = pneg %p146
      $region18: #{tpu_custom_call.1} parent=5 // pred_check_branch
        %149 = sbr.rel (%p147) target = $region20
      $region19: #{tpu_custom_call.1} parent=5 // pred_region
        // Predicated region
        $region21: #{tpu_custom_call.1} parent=19 // pred_check
          %p150 = pneg %p82
        $region22: #{tpu_custom_call.1} parent=19 // pred_check_branch
          %152 = sbr.rel (%p150) target = $region24
        $region23: #{tpu_custom_call.1} parent=19 // pred_region
          %s153 = sand.u32 %s72, 1
          %s154 = scalar_lea.sflag [#allocation6], %s153
          %s155 = sand.u32 %s72, 1
          %s156 = smul.addr %s155, 8
          %s157 = scalar_lea.vmem [#allocation5], %s156
          %s158 = smul.u32 2, %s24
          %s160 = ssub.s32 128, 128
          %161 = vsyncadd %s154, %s160
          %s162 = smul.addr %s22, 2
          %s163 = sadd.s32 %s158, %s162
          %s164 = smul.addr %s163, 64
          %s165 = scalar_lea.hbm %s1, %s164
          %s167 = sshll.u32 %s157, 4
          %s168 = int_to_ptr.vmem [resolvable:$true] %s167
          %170 = dma.hbm_to_vmem [thread:$0]  %s165, 128, %s168, %s154
        $region24: #{tpu_custom_call.1} parent=19 // pred_fallthru
          _
      $region20: #{tpu_custom_call.1} parent=5 // pred_fallthru
        _
      %p171 = scmp.le.s32.totalorder 1, %s15
      %p172 = scmp.lt.s32.totalorder %s15, 3
      %p173 = pnand %p171, %p172
      %p174 = pneg %p173
      // Predicated region
      $region25: #{tpu_custom_call.1} parent=5 // pred_check
        _
      $region26: #{tpu_custom_call.1} parent=5 // pred_check_branch
        %176 = sbr.rel (%p173) target = $region28
      $region27: #{tpu_custom_call.1} parent=5 // pred_region
        %s177 = ssub.s32 %s15, 1
        // Predicated region
        $region29: #{tpu_custom_call.1} parent=27 // pred_check
          %p178 = pneg %p60
        $region30: #{tpu_custom_call.1} parent=27 // pred_check_branch
          %180 = sbr.rel (%p178) target = $region32
        $region31: #{tpu_custom_call.1} parent=27 // pred_region
          %181 = dma.done [#allocation3], 64
        $region32: #{tpu_custom_call.1} parent=27 // pred_fallthru
          _
        %s182 = sand.u32 %s75, 1
        %s183 = scalar_lea.sflag [#allocation6], %s182
        %s184 = sand.u32 %s75, 1
        %s185 = smul.addr %s184, 8
        %s186 = scalar_lea.vmem [#allocation5], %s185
        // Predicated region
        $region33: #{tpu_custom_call.1} parent=27 // pred_check
          %p187 = pneg %p88
        $region34: #{tpu_custom_call.1} parent=27 // pred_check_branch
          %189 = sbr.rel (%p187) target = $region36
        $region35: #{tpu_custom_call.1} parent=27 // pred_region
          %190 = dma.done %s183, 128
        $region36: #{tpu_custom_call.1} parent=27 // pred_fallthru
          _
        %p191 = pneg %p60
        %p192 = pneg %p57
        %s193 = sand.u32 %s75, 1
        %s194 = scalar_lea.sflag [#allocation6], %s193
        %s195 = sand.u32 %s75, 1
        %s196 = smul.addr %s195, 8
        %s197 = scalar_lea.vmem [#allocation5], %s196
        %p198 = pneg %p88
        %p199 = pneg %p85
        %p200 = pneg %p118
        %p201 = pneg %p115
        %s202 = sand.u32 %s105, 1
        %s203 = scalar_lea.sflag [#allocation4], %s202
        %s204 = sand.u32 %s105, 1
        %s205 = smul.addr %s204, 8
        %s206 = scalar_lea.vmem [#allocation7], %s205
        %s207 = smul.u32 2, %s27
        %s208 = smul.u32 2, %s27
        %v209 = vld [vmem:[#allocation2] sm:$0xf]
        %v210 = vld [vmem:[%s186] sm:$0xff]
        %v212 = vcombine.high %v210, %v210
        %vm213 = vcmask 31744
        %v215 = vsel %vm213, %v209, 0
        %vm217 = vcmask 1043456
        %v218 = vsel %vm217, %v210, 0
        %v220 = vsel %vm217, %v212, 0
        %222 = vmatprep.subr.mxu0 %v220
        %223 = vmatpush1.msra.mxu0 %v218
        %224 = vmatprep.subr.mxu0 0.0
        %225 = vmatpush1.msra.mxu0 0.0
        %226 = vmatprep.subr.mxu0 0.0
        %227 = vmatpush1.msra.mxu0 0.0
        %228 = vmatprep.subr.mxu0 0.0
        %229 = vmatpush1.msra.mxu0 0.0
        %230 = vmatprep.subr.mxu0 0.0
        %231 = vmatpush1.msra.mxu0 0.0
        %232 = vmatprep.subr.mxu0 0.0
        %233 = vmatpush1.msra.mxu0 0.0
        %234 = vmatprep.subr.mxu0 0.0
        %235 = vmatpush1.msra.mxu0 0.0
        %236 = vmatprep.subr.mxu0 0.0
        %237 = vmatpush1.msra.mxu0 0.0
        %238 = vmatprep.subr.mxu0 0.0
        %239 = vmatpush1.msra.mxu0 0.0
        %240 = vmatprep.subr.mxu0 0.0
        %241 = vmatpush1.msra.mxu0 0.0
        %242 = vmatprep.subr.mxu0 0.0
        %243 = vmatpush1.msra.mxu0 0.0
        %244 = vmatprep.subr.mxu0 0.0
        %245 = vmatpush1.msra.mxu0 0.0
        %246 = vmatprep.subr.mxu0 0.0
        %247 = vmatpush1.msra.mxu0 0.0
        %248 = vmatprep.subr.mxu0 0.0
        %249 = vmatpush1.msra.mxu0 0.0
        %250 = vmatprep.subr.mxu0 0.0
        %251 = vmatpush1.msra.mxu0 0.0
        %252 = vmatprep.subr.mxu0 0.0
        %253 = vmatpush1.msra.mxu0 0.0
        %254 = vmatprep.subr.mxu0 0.0
        %255 = vmatpush1.msra.mxu0 0.0
        %256 = vmatprep.subr.mxu0 0.0
        %257 = vmatpush1.msra.mxu0 0.0
        %258 = vmatprep.subr.mxu0 0.0
        %259 = vmatpush1.msra.mxu0 0.0
        %260 = vmatprep.subr.mxu0 0.0
        %261 = vmatpush1.msra.mxu0 0.0
        %262 = vmatprep.subr.mxu0 0.0
        %263 = vmatpush1.msra.mxu0 0.0
        %264 = vmatprep.subr.mxu0 0.0
        %265 = vmatpush1.msra.mxu0 0.0
        %266 = vmatprep.subr.mxu0 0.0
        %267 = vmatpush1.msra.mxu0 0.0
        %268 = vmatprep.subr.mxu0 0.0
        %269 = vmatpush1.msra.mxu0 0.0
        %270 = vmatprep.subr.mxu0 0.0
        %271 = vmatpush1.msra.mxu0 0.0
        %272 = vmatprep.subr.mxu0 0.0
        %273 = vmatpush1.msra.mxu0 0.0
        %274 = vmatprep.subr.mxu0 0.0
        %275 = vmatpush1.msra.mxu0 0.0
        %276 = vmatprep.subr.mxu0 0.0
        %277 = vmatpush1.msra.mxu0 0.0
        %278 = vmatprep.subr.mxu0 0.0
        %279 = vmatpush1.msra.mxu0 0.0
        %280 = vmatprep.subr.mxu0 0.0
        %281 = vmatpush1.msra.mxu0 0.0
        %282 = vmatprep.subr.mxu0 0.0
        %283 = vmatpush1.msra.mxu0 0.0
        %284 = vmatprep.subr.mxu0 0.0
        %285 = vmatpush1.msra.mxu0 0.0
        %286 = vmatprep.mubr.f32.mxu0 0.0
        %287 = vmatmul.mubr.f32.gmra.mrb[0].mxu0 %v215
        %v288 = vpop.f32.mrb[0].mxu0
        %v289 = vadd.f32 0.0, %v288
        %v290 = vpop.f32.mrb[0].mxu0
        %v291 = vadd.f32 0.0, %v290
        %292 = vdwg.mxu0
        %v295 = vcombine.low %v289, %v291
        %297 = vst [vmem:[%s206] sm:$0xff] %v295
        %s298 = sand.u32 %s105, 1
        %s299 = scalar_lea.sflag [#allocation4], %s298
        %s300 = sand.u32 %s105, 1
        %s301 = smul.addr %s300, 8
        %s302 = scalar_lea.vmem [#allocation7], %s301
        // Predicated region
        $region37: #{tpu_custom_call.1} parent=27 // pred_check
          %p303 = pneg %p115
        $region38: #{tpu_custom_call.1} parent=27 // pred_check_branch
          %305 = sbr.rel (%p303) target = $region40
        $region39: #{tpu_custom_call.1} parent=27 // pred_region
          %s306 = smul.u32 2, %s27
          %s308 = ssub.s32 128, 128
          %309 = vsyncadd %s299, %s308
          %s310 = smul.addr %s26, 2
          %s311 = sadd.s32 %s306, %s310
          %s312 = smul.addr %s25, 2
          %s313 = sadd.s32 %s311, %s312
          %s314 = smul.addr %s313, 64
          %s315 = scalar_lea.hbm %s2, %s314
          %s317 = sshll.u32 %s302, 4
          %s318 = int_to_ptr.vmem [resolvable:$true] %s317
          %320 = dma.vmem_to_hbm [thread:$0]  %s318, 128, %s315, %s299
        $region40: #{tpu_custom_call.1} parent=27 // pred_fallthru
          _
      $region28: #{tpu_custom_call.1} parent=5 // pred_fallthru
        _
      %p321 = scmp.le.s32.totalorder 2, %s15
      // Predicated region
      $region41: #{tpu_custom_call.1} parent=5 // pred_check
        %p322 = pneg %p321
      $region42: #{tpu_custom_call.1} parent=5 // pred_check_branch
        %324 = sbr.rel (%p322) target = $region44
      $region43: #{tpu_custom_call.1} parent=5 // pred_region
        %s325 = ssub.s32 %s15, 2
        // Predicated region
        $region45: #{tpu_custom_call.1} parent=43 // pred_check
          %p326 = pneg %p121
        $region46: #{tpu_custom_call.1} parent=43 // pred_check_branch
          %328 = sbr.rel (%p326) target = $region48
        $region47: #{tpu_custom_call.1} parent=43 // pred_region
          %s329 = sand.u32 %s106, 1
          %s330 = scalar_lea.sflag [#allocation4], %s329
          %s331 = sand.u32 %s106, 1
          %s332 = smul.addr %s331, 8
          %s333 = scalar_lea.vmem [#allocation7], %s332
          %334 = dma.done %s330, 128
        $region48: #{tpu_custom_call.1} parent=43 // pred_fallthru
          _
      $region44: #{tpu_custom_call.1} parent=5 // pred_fallthru
        _
    $region6: #{tpu_custom_call.1} parent=1 // loop_footer
      %s19 = sadd.s32 1, %s15
    $region7: #{tpu_custom_call.1} parent=1 // loop_footer_branch
      %14 = sbr.rel target = $region3
    $region8: #{tpu_custom_call.1} parent=1 // loop_exit
      _
    %335 = vsyncpa [#allocation3], 1
    %s336 = scalar_lea.sflag [#allocation3], 1
    %337 = vsyncpa %s336, 1
    %338 = vsyncpa [#allocation6], 1
    %s339 = scalar_lea.sflag [#allocation6], 1
    %340 = vsyncpa %s339, 1
    %341 = vsyncpa [#allocation4], 1
    %s342 = scalar_lea.sflag [#allocation4], 1
    %343 = vsyncpa %s342, 1

</llo_original>
